<compile_context>
chip_gen: v5e
topology: v5e:2x2
jax: 0.10.0
libtpu: 0.0.40
codegen_flags: <defaults>
</compile_context>

<pallas_src>
import math
import jax
import jax.numpy as jnp
from jax.experimental import pallas as pl
from jax.experimental.pallas import tpu as pltpu

N_PAD = 128  # lane-dense width; all hidden sizes / head widths must be <= 128


def mlp_attn_kernel(x_ref, w_ref, v_ref, out_ref):
    """x_ref: (B, D_in) f32, w_ref: (4, 128, 128) f32 weight slab,
    v_ref: (8, 128) f32 row-vector slab [b1, b2, b3, bh, scale, offset, 0, 0],
    out_ref: (B, 128) f32 fused head output."""
    d_in = x_ref.shape[1]
    x = x_ref[...]

    # fc1 + relu  (zero-padded weight columns give relu(0+0)=0 in pad lanes)
    h = jnp.dot(x, w_ref[0][:d_in, :], preferred_element_type=jnp.float32)
    h = jnp.maximum(h + v_ref[0:1, :], 0.0)
    # fc2 + relu
    h = jnp.dot(h, w_ref[1], preferred_element_type=jnp.float32)
    h = jnp.maximum(h + v_ref[1:2, :], 0.0)
    # fc3 + relu
    h = jnp.dot(h, w_ref[2], preferred_element_type=jnp.float32)
    h = jnp.maximum(h + v_ref[2:3, :], 0.0)
    # fused heads (fa | gap | prep | zero-pad) + per-column sigmoid scale/offset
    y = jnp.dot(h, w_ref[3], preferred_element_type=jnp.float32) + v_ref[3:4, :]
    out_ref[...] = (jax.nn.sigmoid(y) * v_ref[4:5, :]
                    + v_ref[5:6, :]).astype(out_ref.dtype)


def prepare_params(p):
    """One-time packing of raw (in, out) weights / (1, out) biases into the
    kernel's two slabs.  Call once at init, NOT per forward."""
    d_in, h1 = p["w1"].shape
    h2 = p["w2"].shape[1]
    S, NG, NP = p["wfa"].shape[1], p["wgap"].shape[1], p["wprep"].shape[1]
    assert max(d_in, h1, h2, S + NG + NP) <= N_PAD

    def pad2(a, rows, cols):
        return jnp.pad(a, ((0, rows - a.shape[0]), (0, cols - a.shape[1])))

    wh = jnp.concatenate([p["wfa"], p["wgap"], p["wprep"]], axis=1)
    bh = jnp.concatenate([p["bfa"], p["bgap"], p["bprep"]], axis=1)

    W = jnp.stack([pad2(p["w1"], N_PAD, N_PAD),
                   pad2(p["w2"], N_PAD, N_PAD),
                   pad2(p["w3"], N_PAD, N_PAD),
                   pad2(wh,      N_PAD, N_PAD)], axis=0)

    pi = math.pi
    scale = jnp.concatenate([
        jnp.full((1, S), 4.0 / 180.0 * pi, jnp.float32),
        jnp.full((1, NG), 0.25, jnp.float32),
        jnp.full((1, NP), 0.04, jnp.float32)], axis=1)
    offset = jnp.concatenate([
        jnp.full((1, S), 2.0 / 180.0 * pi, jnp.float32),
        jnp.full((1, NG), 0.75, jnp.float32),
        jnp.full((1, NP), 0.08, jnp.float32)], axis=1)

    V = jnp.concatenate([pad2(p["b1"], 1, N_PAD),
                         pad2(p["b2"], 1, N_PAD),
                         pad2(p["b3"], 1, N_PAD),
                         pad2(bh, 1, N_PAD),
                         pad2(scale, 1, N_PAD),
                         pad2(offset, 1, N_PAD),
                         jnp.zeros((2, N_PAD), jnp.float32)], axis=0)  # (8, 128)

    return {"W": W, "V": V, "heads": (S, NG, NP)}


def mlp_with_attention(x, packed):
    """x: (B, D_in) f32.  packed: output of prepare_params()."""
    B, d_in = x.shape
    b_pad = pl.cdiv(B, 8) * 8
    if b_pad != B:
        x = jnp.pad(x, ((0, b_pad - B), (0, 0)))

    cost = pl.CostEstimate(
        flops=2 * b_pad * N_PAD * N_PAD * 4,
        transcendentals=b_pad * N_PAD,
        bytes_accessed=4 * (b_pad * d_in + 4 * N_PAD * N_PAD + 8 * N_PAD
                            + b_pad * N_PAD))

    vmem = pl.BlockSpec(memory_space=pltpu.MemorySpace.VMEM)
    out = pl.pallas_call(
        mlp_attn_kernel,
        out_shape=jax.ShapeDtypeStruct((b_pad, N_PAD), jnp.float32),
        in_specs=[vmem, vmem, vmem],
        out_specs=vmem,
        cost_estimate=cost,
    )(x, packed["W"], packed["V"])

    S, NG, NP = packed["heads"]
    sig = out[:B, :S]
    gap = out[:B, S:S + NG]
    prep = out[:B, S + NG:S + NG + NP]
    return sig, gap, prep


def init_params(key, input_size, hidden1, hidden2, seq_length):
    """Deterministic init mimicking nn.Linear (uniform +-1/sqrt(fan_in)).
    Weights stored as (in, out) = transpose of PyTorch's (out, in)."""
    def linear(k, fan_in, fan_out):
        kw, kb = jax.random.split(k)
        bound = 1.0 / math.sqrt(fan_in)
        w = jax.random.uniform(kw, (fan_in, fan_out), jnp.float32, -bound, bound)
        b = jax.random.uniform(kb, (1, fan_out), jnp.float32, -bound, bound)
        return w, b

    keys = jax.random.split(key, 6)
    p = {}
    p["w1"], p["b1"] = linear(keys[0], input_size, hidden1)
    p["w2"], p["b2"] = linear(keys[1], hidden1, hidden2)
    p["w3"], p["b3"] = linear(keys[2], hidden2, hidden1)
    p["wfa"], p["bfa"] = linear(keys[3], hidden1, seq_length)
    p["wgap"], p["bgap"] = linear(keys[4], hidden1, 5)
    p["wprep"], p["bprep"] = linear(keys[5], hidden1, 1)
    return p


def reference_forward(x, p):
    pi = math.pi
    h = jnp.maximum(x @ p["w1"] + p["b1"], 0.0)
    h = jnp.maximum(h @ p["w2"] + p["b2"], 0.0)
    h = jnp.maximum(h @ p["w3"] + p["b3"], 0.0)
    sig = jax.nn.sigmoid(h @ p["wfa"] + p["bfa"]) * (4.0 / 180.0 * pi) + (2.0 / 180.0 * pi)
    gap = jax.nn.sigmoid(h @ p["wgap"] + p["bgap"]) * 0.25 + 0.75
    prep = jax.nn.sigmoid(h @ p["wprep"] + p["bprep"]) * 0.04 + 0.08
    return sig, gap, prep


if __name__ == "__main__":
    # Small shapes consistent with the module's forward:
    # x: (batch, input_size) -> (batch, seq_length), (batch, 5), (batch, 1)
    batch, input_size, hidden1, hidden2, seq_length = 16, 32, 64, 32, 40

    key = jax.random.PRNGKey(0)
    kx, kp = jax.random.split(key)
    x = jax.random.normal(kx, (batch, input_size), dtype=jnp.float32)
    params = init_params(kp, input_size, hidden1, hidden2, seq_length)

    # One-time packing (hoisted out of the forward path).
    packed = prepare_params(params)
    jax.block_until_ready(packed)

    sig, gap, prep = mlp_with_attention(x, packed)
    jax.block_until_ready((sig, gap, prep))

    # All math is f32 now, so the tolerance is tight relative to the sig head's
    # ~[0.035, 0.105] output range.
    ref_sig, ref_gap, ref_prep = reference_forward(x, params)
    assert sig.shape == ref_sig.shape and gap.shape == ref_gap.shape and prep.shape == ref_prep.shape
    assert jnp.allclose(sig, ref_sig, atol=2e-3, rtol=2e-3)
    assert jnp.allclose(gap, ref_gap, atol=2e-3, rtol=2e-3)
    assert jnp.allclose(prep, ref_prep, atol=2e-3, rtol=2e-3)

    print("KERNEL_OK")
</pallas_src>

<mosaic_0001>
module attributes {stable_mosaic.version = 11 : i64} {
  func.func @mlp_attn_kernel(%arg0: memref<16x32xf32, #tpu.memory_space<vmem>>, %arg1: memref<4x128x128xf32, #tpu.memory_space<vmem>>, %arg2: memref<8x128xf32, #tpu.memory_space<vmem>>, %arg3: memref<16x128xf32, #tpu.memory_space<vmem>>) attributes {dimension_semantics = [], scalar_prefetch = 0 : i64, scratch_operands = 0 : i64, tpu.core_type = #tpu.core_type<tc>} {
    %c0 = arith.constant 0 : index
    %c0_0 = arith.constant 0 : index
    %0 = vector.load %arg0[%c0, %c0_0] : memref<16x32xf32, #tpu.memory_space<vmem>>, vector<16x32xf32>
    %c0_1 = arith.constant 0 : index
    %c0_2 = arith.constant 0 : index
    %c0_3 = arith.constant 0 : index
    %1 = vector.load %arg1[%c0_1, %c0_2, %c0_3] : memref<4x128x128xf32, #tpu.memory_space<vmem>>, vector<1x128x128xf32>
    %2 = vector.shape_cast %1 : vector<1x128x128xf32> to vector<128x128xf32>
    %3 = vector.extract_strided_slice %2 {offsets = [0, 0], sizes = [32, 128], strides = [1, 1]} : vector<128x128xf32> to vector<32x128xf32>
    %cst = arith.constant dense<0.000000e+00> : vector<16x128xf32>
    %4 = tpu.matmul %0, %3, %cst {dimension_numbers = #tpu.dot_dimension_numbers<[1], [0], [0], [1], [0, 0, 1, 1], [], []>} : vector<16x32xf32>, vector<32x128xf32>, vector<16x128xf32> -> vector<16x128xf32>
    %c0_4 = arith.constant 0 : index
    %c0_5 = arith.constant 0 : index
    %5 = vector.load %arg2[%c0_4, %c0_5] : memref<8x128xf32, #tpu.memory_space<vmem>>, vector<1x128xf32>
    %6 = vector.broadcast %5 : vector<1x128xf32> to vector<16x128xf32>
    %7 = arith.addf %4, %6 : vector<16x128xf32>
    %cst_6 = arith.constant 0.000000e+00 : f32
    %8 = vector.broadcast %cst_6 : f32 to vector<16x128xf32>
    %9 = arith.maximumf %7, %8 : vector<16x128xf32>
    %c1 = arith.constant 1 : index
    %c0_7 = arith.constant 0 : index
    %c0_8 = arith.constant 0 : index
    %10 = vector.load %arg1[%c1, %c0_7, %c0_8] : memref<4x128x128xf32, #tpu.memory_space<vmem>>, vector<1x128x128xf32>
    %11 = vector.shape_cast %10 : vector<1x128x128xf32> to vector<128x128xf32>
    %cst_9 = arith.constant dense<0.000000e+00> : vector<16x128xf32>
    %12 = tpu.matmul %9, %11, %cst_9 {dimension_numbers = #tpu.dot_dimension_numbers<[1], [0], [0], [1], [0, 0, 1, 1], [], []>} : vector<16x128xf32>, vector<128x128xf32>, vector<16x128xf32> -> vector<16x128xf32>
    %c1_10 = arith.constant 1 : index
    %c0_11 = arith.constant 0 : index
    %13 = vector.load %arg2[%c1_10, %c0_11] : memref<8x128xf32, #tpu.memory_space<vmem>>, vector<1x128xf32>
    %14 = vector.broadcast %13 : vector<1x128xf32> to vector<16x128xf32>
    %15 = arith.addf %12, %14 : vector<16x128xf32>
    %cst_12 = arith.constant 0.000000e+00 : f32
    %16 = vector.broadcast %cst_12 : f32 to vector<16x128xf32>
    %17 = arith.maximumf %15, %16 : vector<16x128xf32>
    %c2 = arith.constant 2 : index
    %c0_13 = arith.constant 0 : index
    %c0_14 = arith.constant 0 : index
    %18 = vector.load %arg1[%c2, %c0_13, %c0_14] : memref<4x128x128xf32, #tpu.memory_space<vmem>>, vector<1x128x128xf32>
    %19 = vector.shape_cast %18 : vector<1x128x128xf32> to vector<128x128xf32>
    %cst_15 = arith.constant dense<0.000000e+00> : vector<16x128xf32>
    %20 = tpu.matmul %17, %19, %cst_15 {dimension_numbers = #tpu.dot_dimension_numbers<[1], [0], [0], [1], [0, 0, 1, 1], [], []>} : vector<16x128xf32>, vector<128x128xf32>, vector<16x128xf32> -> vector<16x128xf32>
    %c2_16 = arith.constant 2 : index
    %c0_17 = arith.constant 0 : index
    %21 = vector.load %arg2[%c2_16, %c0_17] : memref<8x128xf32, #tpu.memory_space<vmem>>, vector<1x128xf32>
    %22 = vector.broadcast %21 : vector<1x128xf32> to vector<16x128xf32>
    %23 = arith.addf %20, %22 : vector<16x128xf32>
    %cst_18 = arith.constant 0.000000e+00 : f32
    %24 = vector.broadcast %cst_18 : f32 to vector<16x128xf32>
    %25 = arith.maximumf %23, %24 : vector<16x128xf32>
    %c3 = arith.constant 3 : index
    %c0_19 = arith.constant 0 : index
    %c0_20 = arith.constant 0 : index
    %26 = vector.load %arg1[%c3, %c0_19, %c0_20] : memref<4x128x128xf32, #tpu.memory_space<vmem>>, vector<1x128x128xf32>
    %27 = vector.shape_cast %26 : vector<1x128x128xf32> to vector<128x128xf32>
    %cst_21 = arith.constant dense<0.000000e+00> : vector<16x128xf32>
    %28 = tpu.matmul %25, %27, %cst_21 {dimension_numbers = #tpu.dot_dimension_numbers<[1], [0], [0], [1], [0, 0, 1, 1], [], []>} : vector<16x128xf32>, vector<128x128xf32>, vector<16x128xf32> -> vector<16x128xf32>
    %c3_22 = arith.constant 3 : index
    %c0_23 = arith.constant 0 : index
    %29 = vector.load %arg2[%c3_22, %c0_23] : memref<8x128xf32, #tpu.memory_space<vmem>>, vector<1x128xf32>
    %30 = vector.broadcast %29 : vector<1x128xf32> to vector<16x128xf32>
    %31 = arith.addf %28, %30 : vector<16x128xf32>
    %32 = arith.negf %31 : vector<16x128xf32>
    %33 = math.exp %32 : vector<16x128xf32>
    %cst_24 = arith.constant 1.000000e+00 : f32
    %34 = vector.broadcast %cst_24 : f32 to vector<16x128xf32>
    %35 = arith.addf %34, %33 : vector<16x128xf32>
    %36 = arith.divf %34, %35 : vector<16x128xf32>
    %c4 = arith.constant 4 : index
    %c0_25 = arith.constant 0 : index
    %37 = vector.load %arg2[%c4, %c0_25] : memref<8x128xf32, #tpu.memory_space<vmem>>, vector<1x128xf32>
    %38 = vector.broadcast %37 : vector<1x128xf32> to vector<16x128xf32>
    %39 = arith.mulf %36, %38 : vector<16x128xf32>
    %c5 = arith.constant 5 : index
    %c0_26 = arith.constant 0 : index
    %40 = vector.load %arg2[%c5, %c0_26] : memref<8x128xf32, #tpu.memory_space<vmem>>, vector<1x128xf32>
    %41 = vector.broadcast %40 : vector<1x128xf32> to vector<16x128xf32>
    %42 = arith.addf %39, %41 : vector<16x128xf32>
    %c0_27 = arith.constant 0 : index
    %c0_28 = arith.constant 0 : index
    %43 = vector.load %arg3[%c0_27, %c0_28] : memref<16x128xf32, #tpu.memory_space<vmem>>, vector<16x128xf32>
    tpu.vector_store %arg3[%c0_27, %c0_28], %42 {strides = array<i32>} : memref<16x128xf32, #tpu.memory_space<vmem>>, vector<16x128xf32>,
    return
  }
}

</mosaic_0001>

<llo_original>
// kernel: tpu_custom_call.1
$region0: #{tpu_custom_call.1}
  #allocation0 [shape = 'u32[]', space=smem, size = 0x4, offset = 0x4, fixed_abs, tag = 'smem constant byte address 0x4 - core index']
  #allocation1 [shape = 'u32[72,128]{1,0:T(1,128)}', space=vmem, size = 0x9000, scoped, tag = 'internal scratch']
  %s0 = inlined_call_operand.hbm [shape: f32[16,32], index: 0, kind: input, shape index: {}]
  %s1 = inlined_call_operand.hbm [shape: f32[4,128,128], index: 1, kind: input, shape index: {}]
  %s2 = inlined_call_operand.hbm [shape: f32[8,128], index: 2, kind: input, shape index: {}]
  %s3 = inlined_call_operand.hbm [shape: f32[16,128], index: 3, kind: output, shape index: {}]
  %s4 = sld [smem:[#allocation0]]
  $region34: #{tpu_custom_call.1} parent=0
    _
  %s6 = ssub.s32 1, %s4
  %s7 = scalar_select 0, %s6, %s4
  $region1: #{tpu_custom_call.1} parent=0
    #allocation2 [shape = 'u8[8192]{0}', space=vmem, size = 0x2000, scoped, tag = 'input window, operand 0, single buffered']
    #allocation3 [shape = 's32[1]{0}', space=sflag, size = 0x4, scoped, tag = 'scoped memory for tpu_custom_call.1']
    #allocation4 [shape = 's32[1]{0}', space=sflag, size = 0x4, scoped, tag = 'scoped memory for tpu_custom_call.1']
    #allocation5 [shape = 'u8[262144]{0}', space=vmem, size = 0x40000, scoped, tag = 'input window, operand 1, single buffered']
    #allocation6 [shape = 's32[1]{0}', space=sflag, size = 0x4, scoped, tag = 'scoped memory for tpu_custom_call.1']
    #allocation7 [shape = 'u8[4096]{0}', space=vmem, size = 0x1000, scoped, tag = 'input window, operand 2, single buffered']
    #allocation8 [shape = 'u8[8192]{0}', space=vmem, size = 0x2000, scoped, tag = 'output window, operand 0, single buffered']
    %8 = vsyncpa [#allocation3], 0
    %9 = vsyncpa [#allocation6], 0
    %10 = vsyncpa [#allocation4], 0
    // Predicated region
    $region2: #{tpu_custom_call.1} parent=1 // pred_check
      _
    $region3: #{tpu_custom_call.1} parent=1 // pred_check_branch
      %12 = sbr.rel (0) target = $region5
    $region4: #{tpu_custom_call.1} parent=1 // pred_region
      %14 = vsyncadd [#allocation3], 0
      %s15 = sshll.u32 %s0, 4
      %s16 = int_to_ptr.hbm [resolvable:$true] %s15
      %s17 = sshll.u32 [#allocation2], 4
      %s18 = int_to_ptr.vmem [resolvable:$true] %s17
      %23 = dma.hbm_to_vmem [thread:$0]  %s16, 256, %s18, [#allocation3], 128, 128, 8
    $region5: #{tpu_custom_call.1} parent=1 // pred_fallthru
      _
    // Predicated region
    $region6: #{tpu_custom_call.1} parent=1 // pred_check
      _
    $region7: #{tpu_custom_call.1} parent=1 // pred_check_branch
      %25 = sbr.rel (0) target = $region9
    $region8: #{tpu_custom_call.1} parent=1 // pred_region
      %27 = vsyncadd [#allocation6], 0
      %s28 = sshll.u32 %s1, 4
      %s29 = int_to_ptr.hbm [resolvable:$true] %s28
      %s30 = sshll.u32 [#allocation5], 4
      %s31 = int_to_ptr.vmem [resolvable:$true] %s30
      %36 = dma.hbm_to_vmem [thread:$0]  %s29, 8192, %s31, [#allocation6], 128, 128, 8
    $region9: #{tpu_custom_call.1} parent=1 // pred_fallthru
      _
    // Predicated region
    $region10: #{tpu_custom_call.1} parent=1 // pred_check
      _
    $region11: #{tpu_custom_call.1} parent=1 // pred_check_branch
      %38 = sbr.rel (0) target = $region13
    $region12: #{tpu_custom_call.1} parent=1 // pred_region
      %40 = vsyncadd [#allocation6], 0
      %s42 = sshll.u32 %s2, 4
      %s43 = int_to_ptr.hbm [resolvable:$true] %s42
      %s44 = sshll.u32 [#allocation7], 4
      %s45 = int_to_ptr.vmem [resolvable:$true] %s44
      %47 = dma.hbm_to_vmem [thread:$0]  %s43, 128, %s45, [#allocation6]
    $region13: #{tpu_custom_call.1} parent=1 // pred_fallthru
      _
    // Predicated region
    $region14: #{tpu_custom_call.1} parent=1 // pred_check
      _
    $region15: #{tpu_custom_call.1} parent=1 // pred_check_branch
      %49 = sbr.rel (0) target = $region17
    $region16: #{tpu_custom_call.1} parent=1 // pred_region
      %51 = dma.done [#allocation3], 256
    $region17: #{tpu_custom_call.1} parent=1 // pred_fallthru
      _
    // Predicated region
    $region18: #{tpu_custom_call.1} parent=1 // pred_check
      _
    $region19: #{tpu_custom_call.1} parent=1 // pred_check_branch
      %53 = sbr.rel (0) target = $region21
    $region20: #{tpu_custom_call.1} parent=1 // pred_region
      %55 = dma.done [#allocation6], 8192
    $region21: #{tpu_custom_call.1} parent=1 // pred_fallthru
      _
    // Predicated region
    $region22: #{tpu_custom_call.1} parent=1 // pred_check
      _
    $region23: #{tpu_custom_call.1} parent=1 // pred_check_branch
      %57 = sbr.rel (0) target = $region25
    $region24: #{tpu_custom_call.1} parent=1 // pred_region
      %59 = dma.done [#allocation6], 128
    $region25: #{tpu_custom_call.1} parent=1 // pred_fallthru
      _
    %v60 = vld [vmem:[#allocation2] sm:$0xff]
    %v61 = vld [vmem:[#allocation2 + $0x8] sm:$0xff]
    %v62 = vld [vmem:[#allocation5] sm:$0xff]
    %v63 = vld [vmem:[#allocation5 + $0x8] sm:$0xff]
    %v64 = vld [vmem:[#allocation5 + $0x10] sm:$0xff]
    %v65 = vld [vmem:[#allocation5 + $0x18] sm:$0xff]
    %v66 = vld [vmem:[#allocation7] sm:$0x1]
    %v67 = vperm.slane %v66, 0
    %vm68 = vcmask 261120
    %v70 = vsel %vm68, %v60, 0
    %v73 = vsel %vm68, %v61, 0
    %75 = vmatpush.msra.mxu0 0.0
    %76 = vmatpush.msra.mxu0 0.0
    %77 = vmatpush.msra.mxu0 0.0
    %78 = vmatpush.msra.mxu0 0.0
    %79 = vmatpush.msra.mxu0 0.0
    %80 = vmatpush.msra.mxu0 0.0
    %81 = vmatpush.msra.mxu0 0.0
    %82 = vmatpush.msra.mxu0 0.0
    %83 = vmatpush.msra.mxu0 0.0
    %84 = vmatpush.msra.mxu0 0.0
    %85 = vmatpush.msra.mxu0 0.0
    %86 = vmatpush.msra.mxu0 0.0
    %87 = vmatpush.msra.mxu0 %v65
    %88 = vmatpush.msra.mxu0 %v64
    %89 = vmatpush.msra.mxu0 %v63
    %90 = vmatpush.msra.mxu0 %v62
    %91 = vmatmul.f32.gmra.mxu0 %v70
    %v92 = vpop.f32.mrf.mxu0
    %v93 = vadd.f32 %v67, %v92
    %94 = vmatmul.f32.gmra.mxu0 %v73
    %v95 = vpop.f32.mrf.mxu0
    %v96 = vadd.f32 %v67, %v95
    %97 = vdwg.mxu0
    %v98 = vmax.f32 %v93, 0.0
    %v99 = vmax.f32 %v96, 0.0
    %s100 = scalar_lea.vmem [#allocation5], 128
    %v101 = vld [vmem:[%s100] sm:$0xff]
    %v102 = vld [vmem:[%s100 + $0x8] sm:$0xff]
    %v103 = vld [vmem:[%s100 + $0x10] sm:$0xff]
    %v104 = vld [vmem:[%s100 + $0x18] sm:$0xff]
    %v105 = vld [vmem:[%s100 + $0x20] sm:$0xff]
    %v106 = vld [vmem:[%s100 + $0x28] sm:$0xff]
    %v107 = vld [vmem:[%s100 + $0x30] sm:$0xff]
    %v108 = vld [vmem:[%s100 + $0x38] sm:$0xff]
    %v109 = vld [vmem:[%s100 + $0x40] sm:$0xff]
    %v110 = vld [vmem:[%s100 + $0x48] sm:$0xff]
    %v111 = vld [vmem:[%s100 + $0x50] sm:$0xff]
    %v112 = vld [vmem:[%s100 + $0x58] sm:$0xff]
    %v113 = vld [vmem:[%s100 + $0x60] sm:$0xff]
    %v114 = vld [vmem:[%s100 + $0x68] sm:$0xff]
    %v115 = vld [vmem:[%s100 + $0x70] sm:$0xff]
    %v116 = vld [vmem:[%s100 + $0x78] sm:$0xff]
    %v117 = vld [vmem:[#allocation7 + $0x1] sm:$0x1]
    %v118 = vperm.slane %v117, 0
    %119 = vmatpush.msra.mxu0 %v116
    %120 = vmatpush.msra.mxu0 %v115
    %121 = vmatpush.msra.mxu0 %v114
    %122 = vmatpush.msra.mxu0 %v113
    %123 = vmatpush.msra.mxu0 %v112
    %124 = vmatpush.msra.mxu0 %v111
    %125 = vmatpush.msra.mxu0 %v110
    %126 = vmatpush.msra.mxu0 %v109
    %127 = vmatpush.msra.mxu0 %v108
    %128 = vmatpush.msra.mxu0 %v107
    %129 = vmatpush.msra.mxu0 %v106
    %130 = vmatpush.msra.mxu0 %v105
    %131 = vmatpush.msra.mxu0 %v104
    %132 = vmatpush.msra.mxu0 %v103
    %133 = vmatpush.msra.mxu0 %v102
    %134 = vmatpush.msra.mxu0 %v101
    %135 = vmatmul.f32.gmra.mxu0 %v98
    %v136 = vpop.f32.mrf.mxu0
    %v137 = vadd.f32 %v118, %v136
    %138 = vmatmul.f32.gmra.mxu0 %v99
    %v139 = vpop.f32.mrf.mxu0
    %v140 = vadd.f32 %v118, %v139
    %141 = vdwg.mxu0
    %v142 = vmax.f32 %v137, 0.0
    %v143 = vmax.f32 %v140, 0.0
    %s144 = scalar_lea.vmem [#allocation5], 256
    %v145 = vld [vmem:[%s144] sm:$0xff]
    %v146 = vld [vmem:[%s144 + $0x8] sm:$0xff]
    %v147 = vld [vmem:[%s144 + $0x10] sm:$0xff]
    %v148 = vld [vmem:[%s144 + $0x18] sm:$0xff]
    %v149 = vld [vmem:[%s144 + $0x20] sm:$0xff]
    %v150 = vld [vmem:[%s144 + $0x28] sm:$0xff]
    %v151 = vld [vmem:[%s144 + $0x30] sm:$0xff]
    %v152 = vld [vmem:[%s144 + $0x38] sm:$0xff]
    %v153 = vld [vmem:[%s144 + $0x40] sm:$0xff]
    %v154 = vld [vmem:[%s144 + $0x48] sm:$0xff]
    %v155 = vld [vmem:[%s144 + $0x50] sm:$0xff]
    %v156 = vld [vmem:[%s144 + $0x58] sm:$0xff]
    %v157 = vld [vmem:[%s144 + $0x60] sm:$0xff]
    %v158 = vld [vmem:[%s144 + $0x68] sm:$0xff]
    %v159 = vld [vmem:[%s144 + $0x70] sm:$0xff]
    %v160 = vld [vmem:[%s144 + $0x78] sm:$0xff]
    %v161 = vld [vmem:[#allocation7 + $0x2] sm:$0x1]
    %v162 = vperm.slane %v161, 0
    %163 = vmatpush.msra.mxu0 %v160
    %164 = vmatpush.msra.mxu0 %v159
    %165 = vmatpush.msra.mxu0 %v158
    %166 = vmatpush.msra.mxu0 %v157
    %167 = vmatpush.msra.mxu0 %v156
    %168 = vmatpush.msra.mxu0 %v155
    %169 = vmatpush.msra.mxu0 %v154
    %170 = vmatpush.msra.mxu0 %v153
    %171 = vmatpush.msra.mxu0 %v152
    %172 = vmatpush.msra.mxu0 %v151
    %173 = vmatpush.msra.mxu0 %v150
    %174 = vmatpush.msra.mxu0 %v149
    %175 = vmatpush.msra.mxu0 %v148
    %176 = vmatpush.msra.mxu0 %v147
    %177 = vmatpush.msra.mxu0 %v146
    %178 = vmatpush.msra.mxu0 %v145
    %179 = vmatmul.f32.gmra.mxu0 %v142
    %v180 = vpop.f32.mrf.mxu0
    %v181 = vadd.f32 %v162, %v180
    %182 = vmatmul.f32.gmra.mxu0 %v143
    %v183 = vpop.f32.mrf.mxu0
    %v184 = vadd.f32 %v162, %v183
    %185 = vdwg.mxu0
    %v186 = vmax.f32 %v181, 0.0
    %v187 = vmax.f32 %v184, 0.0
    %s188 = scalar_lea.vmem [#allocation5], 384
    %v189 = vld [vmem:[%s188] sm:$0xff]
    %v190 = vld [vmem:[%s188 + $0x8] sm:$0xff]
    %v191 = vld [vmem:[%s188 + $0x10] sm:$0xff]
    %v192 = vld [vmem:[%s188 + $0x18] sm:$0xff]
    %v193 = vld [vmem:[%s188 + $0x20] sm:$0xff]
    %v194 = vld [vmem:[%s188 + $0x28] sm:$0xff]
    %v195 = vld [vmem:[%s188 + $0x30] sm:$0xff]
    %v196 = vld [vmem:[%s188 + $0x38] sm:$0xff]
    %v197 = vld [vmem:[%s188 + $0x40] sm:$0xff]
    %v198 = vld [vmem:[%s188 + $0x48] sm:$0xff]
    %v199 = vld [vmem:[%s188 + $0x50] sm:$0xff]
    %v200 = vld [vmem:[%s188 + $0x58] sm:$0xff]
    %v201 = vld [vmem:[%s188 + $0x60] sm:$0xff]
    %v202 = vld [vmem:[%s188 + $0x68] sm:$0xff]
    %v203 = vld [vmem:[%s188 + $0x70] sm:$0xff]
    %v204 = vld [vmem:[%s188 + $0x78] sm:$0xff]
    %v205 = vld [vmem:[#allocation7 + $0x3] sm:$0x1]
    %v206 = vperm.slane %v205, 0
    %207 = vmatpush.msra.mxu0 %v204
    %208 = vmatpush.msra.mxu0 %v203
    %209 = vmatpush.msra.mxu0 %v202
    %210 = vmatpush.msra.mxu0 %v201
    %211 = vmatpush.msra.mxu0 %v200
    %212 = vmatpush.msra.mxu0 %v199
    %213 = vmatpush.msra.mxu0 %v198
    %214 = vmatpush.msra.mxu0 %v197
    %215 = vmatpush.msra.mxu0 %v196
    %216 = vmatpush.msra.mxu0 %v195
    %217 = vmatpush.msra.mxu0 %v194
    %218 = vmatpush.msra.mxu0 %v193
    %219 = vmatpush.msra.mxu0 %v192
    %220 = vmatpush.msra.mxu0 %v191
    %221 = vmatpush.msra.mxu0 %v190
    %222 = vmatpush.msra.mxu0 %v189
    %223 = vmatmul.f32.gmra.mxu0 %v186
    %v224 = vpop.f32.mrf.mxu0
    %v225 = vadd.f32 %v206, %v224
    %226 = vmatmul.f32.gmra.mxu0 %v187
    %v227 = vpop.f32.mrf.mxu0
    %v228 = vadd.f32 %v206, %v227
    %229 = vdwg.mxu0
    %v230 = vxor.u32 %v225, 2147483648
    %v231 = vxor.u32 %v228, 2147483648
    %v232 = vmul.f32 %v230, 1.442695
    %v233 = vpow.pop %v232
    %v234 = vmul.f32 %v231, 1.442695
    %v235 = vpow.pop %v234
    %v236 = vadd.f32 %v233, 1.0
    %v237 = vadd.f32 %v235, 1.0
    %v238 = vrcp.pop %v236
    %v239 = vmul.f32 %v236, %v238
    %v240 = vsub.f32 1.0, %v239
    %v241 = vmul.f32 %v238, %v240
    %v242 = vadd.f32 %v238, %v241
    %vm243 = vweird.f32 %v236
    %vm244 = vweird.f32 %v238
    %vm245 = vmor %vm243, %vm244
    %v246 = vsel %vm245, %v238, %v242
    %v247 = vand.u32 2147483647, %v236
    %vm248 = vcmp.eq.f32.partialorder %v247, 8.507059e+37
    %v249 = vand.u32 %v236, 2147483648
    %v250 = vor.u32 1.1754944e-38, %v249
    %v251 = vsel %vm248, %v250, %v246
    %v252 = vmul.f32 1.0, %v251
    %v253 = vrcp.pop %v237
    %v254 = vmul.f32 %v237, %v253
    %v255 = vsub.f32 1.0, %v254
    %v256 = vmul.f32 %v253, %v255
    %v257 = vadd.f32 %v253, %v256
    %vm258 = vweird.f32 %v237
    %vm259 = vweird.f32 %v253
    %vm260 = vmor %vm258, %vm259
    %v261 = vsel %vm260, %v253, %v257
    %v262 = vand.u32 2147483647, %v237
    %vm263 = vcmp.eq.f32.partialorder %v262, 8.507059e+37
    %v264 = vand.u32 %v237, 2147483648
    %v265 = vor.u32 1.1754944e-38, %v264
    %v266 = vsel %vm263, %v265, %v261
    %v267 = vmul.f32 1.0, %v266
    %v268 = vld [vmem:[#allocation7 + $0x4] sm:$0x1]
    %v269 = vperm.slane %v268, 0
    %v270 = vmul.f32 %v252, %v269
    %v271 = vmul.f32 %v267, %v269
    %v272 = vld [vmem:[#allocation7 + $0x5] sm:$0x1]
    %v273 = vperm.slane %v272, 0
    %v274 = vadd.f32 %v270, %v273
    %v275 = vadd.f32 %v271, %v273
    %276 = vst [vmem:[#allocation8] sm:$0xff] %v274
    %277 = vst [vmem:[#allocation8 + $0x8] sm:$0xff] %v275
    // Predicated region
    $region26: #{tpu_custom_call.1} parent=1 // pred_check
      _
    $region27: #{tpu_custom_call.1} parent=1 // pred_check_branch
      %279 = sbr.rel (0) target = $region29
    $region28: #{tpu_custom_call.1} parent=1 // pred_region
      %281 = vsyncadd [#allocation4], 0
      %s282 = sshll.u32 [#allocation8], 4
      %s283 = int_to_ptr.vmem [resolvable:$true] %s282
      %s284 = sshll.u32 %s3, 4
      %s285 = int_to_ptr.hbm [resolvable:$true] %s284
      %290 = dma.vmem_to_hbm [thread:$0]  %s283, 256, %s285, [#allocation4], 128, 128, 8
    $region29: #{tpu_custom_call.1} parent=1 // pred_fallthru
      _
    // Predicated region
    $region30: #{tpu_custom_call.1} parent=1 // pred_check
      _
    $region31: #{tpu_custom_call.1} parent=1 // pred_check_branch
      %292 = sbr.rel (0) target = $region33
    $region32: #{tpu_custom_call.1} parent=1 // pred_region
      %294 = dma.done [#allocation4], 256
    $region33: #{tpu_custom_call.1} parent=1 // pred_fallthru
      _
    %295 = vsyncpa [#allocation3], 1
    %296 = vsyncpa [#allocation6], 1
    %297 = vsyncpa [#allocation4], 1

</llo_original>
